<compile_context>
chip_gen: v6e
topology: v6e:2x2x1
jax: 0.10.0
libtpu: 0.0.40
codegen_flags: <defaults>
</compile_context>

<pallas_src>
import jax
import jax.numpy as jnp
from jax.experimental import pallas as pl
from jax.experimental.pallas import tpu as pltpu


def mlp_kernel(xT_ref, w1_ref, b1_ref, w2_ref, b2_ref, w3_ref, b3_ref, o_ref):
    # xT_ref: (in_features, TB) bf16   (batch on lanes -> lane-dense)
    # w1_ref: (16, in_features) bf16, b1_ref: (16, 1) f32
    # w2_ref: (8, 16) bf16,           b2_ref: (8, 1) f32
    # w3_ref: (8, 1) f32 (fc3 weight as a column), b3_ref: (1, 1) f32
    # o_ref : (1, TB) f32

    # fc1 + ReLU  (MXU, f32 accumulate)
    h1 = jnp.dot(w1_ref[...], xT_ref[...],
                 preferred_element_type=jnp.float32) + b1_ref[...]
    h1 = jnp.maximum(h1, 0.0)                      # (16, TB) f32
    # dropout: inference (serving) semantics -> identity
    # TODO(synk): training-mode dropout (mask + 1/(1-p) scale via pltpu.prng_*) not emitted.

    # fc2 + ReLU  (MXU, f32 accumulate)
    h2 = jnp.dot(w2_ref[...], h1.astype(w2_ref.dtype),
                 preferred_element_type=jnp.float32) + b2_ref[...]
    h2 = jnp.maximum(h2, 0.0)                      # (8, TB) f32

    # fc3 (8 -> 1) on the VPU: broadcast-multiply + sublane reduction (no 1-wide MXU pass)
    z = jnp.sum(h2 * w3_ref[...], axis=0, keepdims=True) + b3_ref[...]   # (1, TB) f32

    # sigmoid: exp on the EUP, approximate reciprocal also on the EUP
    o_ref[...] = pl.reciprocal(1.0 + jnp.exp(-z), approx=True)


def _cdiv(a, b):
    return -(-a // b)


def _round_up(n, m):
    return _cdiv(n, m) * m


def neural_net_forward(x, params, *, block_b=8192):
    """x: (B, input_size) float. Returns (B, 1) float32 sigmoid probabilities."""
    w1, b1, w2, b2, w3c, b3 = params
    B, in_features = x.shape

    # Pick the tile count first so batch padding stays < 128 rows (old scheme could pad
    # up to block_b-1 rows of dead work), then round the tile width up to the 128-lane
    # boundary.  Split moderately sized batches into >= 2 tiles so the "parallel" grid
    # axis can be sharded across v7x's two TensorCores.
    n_tiles = _cdiv(B, block_b)
    if n_tiles == 1 and B >= 512:
        n_tiles = 2
    TB = _round_up(_cdiv(B, n_tiles), 128)
    Bp = TB * n_tiles

    # Lane-dense transposed input: (in_features, Bp), bf16 to halve HBM traffic.
    # (cast + pad + transpose fuse into a single XLA pass over x)
    xT = jnp.pad(x.astype(jnp.bfloat16), ((0, Bp - B), (0, 0))).T

    const = lambda i: (0, 0)   # weights/biases: same block every step -> stay VMEM-resident
    out = pl.pallas_call(
        mlp_kernel,
        out_shape=jax.ShapeDtypeStruct((1, Bp), jnp.float32),
        grid=(n_tiles,),
        in_specs=[
            pl.BlockSpec((in_features, TB), lambda i: (0, i)),
            pl.BlockSpec(w1.shape, const),
            pl.BlockSpec(b1.shape, const),
            pl.BlockSpec(w2.shape, const),
            pl.BlockSpec(b2.shape, const),
            pl.BlockSpec(w3c.shape, const),
            pl.BlockSpec(b3.shape, const),
        ],
        out_specs=pl.BlockSpec((1, TB), lambda i: (0, i)),
        compiler_params=pltpu.CompilerParams(
            dimension_semantics=("parallel",),   # batch tiles are independent
        ),
    )(xT, w1, b1, w2, b2, w3c, b3)

    return out[0, :B].reshape(B, 1)


def init_params(key, input_size):
    # Deterministic init mirroring nn.Linear default: uniform(-1/sqrt(fan_in), 1/sqrt(fan_in)).
    ks = jax.random.split(key, 6)

    def linear(kw, kb, fan_in, fan_out):
        bound = 1.0 / jnp.sqrt(fan_in)
        # PyTorch nn.Linear weight layout (fan_out, fan_in) is already the layout the
        # transposed kernel wants.
        w = jax.random.uniform(kw, (fan_out, fan_in), jnp.float32, -bound, bound)
        b = jax.random.uniform(kb, (fan_out, 1), jnp.float32, -bound, bound)
        return w, b

    w1, b1 = linear(ks[0], ks[1], input_size, 16)
    w2, b2 = linear(ks[2], ks[3], 16, 8)
    w3, b3 = linear(ks[4], ks[5], 8, 1)

    # Kernel storage: fc1/fc2 weights in bf16 (MXU operands), fc3 weight as an (8,1)
    # f32 column (VPU path), biases in f32.
    # Note: l2_reg only affects the training loss, not the forward pass.
    return (w1.astype(jnp.bfloat16), b1,
            w2.astype(jnp.bfloat16), b2,
            w3.T, b3)


if __name__ == "__main__":
    key = jax.random.PRNGKey(0)
    k_x, k_p = jax.random.split(key)

    B, input_size = 8, 32
    x = jax.random.normal(k_x, (B, input_size), jnp.float32)
    params = init_params(k_p, input_size)

    out = jax.block_until_ready(neural_net_forward(x, params))
    assert out.shape == (B, 1)

    # Pure-JAX reference mirroring the kernel's dtype choices (bf16 storage, f32 math).
    w1t, b1, w2t, b2, w3c, b3 = params
    xb = x.astype(jnp.bfloat16).astype(jnp.float32)
    h1 = jnp.maximum(xb @ w1t.astype(jnp.float32).T + b1.T, 0.0)
    h1 = h1.astype(jnp.bfloat16).astype(jnp.float32)
    h2 = jnp.maximum(h1 @ w2t.astype(jnp.float32).T + b2.T, 0.0)
    ref = jax.nn.sigmoid(h2 @ w3c + b3.T)

    assert jnp.allclose(out, ref, atol=2e-2), "mismatch vs reference"
    print("KERNEL_OK")
</pallas_src>

<mosaic_0001>
module attributes {stable_mosaic.version = 11 : i64} {
  func.func @mlp_kernel(%arg0: i32, %arg1: memref<32x128xbf16, #tpu.memory_space<vmem>>, %arg2: memref<16x32xbf16, #tpu.memory_space<vmem>>, %arg3: memref<16x1xf32, #tpu.memory_space<vmem>>, %arg4: memref<8x16xbf16, #tpu.memory_space<vmem>>, %arg5: memref<8x1xf32, #tpu.memory_space<vmem>>, %arg6: memref<8x1xf32, #tpu.memory_space<vmem>>, %arg7: memref<1x1xf32, #tpu.memory_space<vmem>>, %arg8: memref<1x128xf32, #tpu.memory_space<vmem>>) attributes {dimension_semantics = [#tpu.dimension_semantics<parallel>], iteration_bounds = array<i64: 1>, scalar_prefetch = 0 : i64, scratch_operands = 0 : i64, tpu.core_type = #tpu.core_type<tc>, window_params = [{transform_indices = @transform_0, window_bounds = array<i64: 32, 128>}, {pipeline_mode = #tpu.pipeline_mode<synchronous>, transform_indices = @transform_1, window_bounds = array<i64: 16, 32>}, {pipeline_mode = #tpu.pipeline_mode<synchronous>, transform_indices = @transform_2, window_bounds = array<i64: 16, 1>}, {pipeline_mode = #tpu.pipeline_mode<synchronous>, transform_indices = @transform_3, window_bounds = array<i64: 8, 16>}, {pipeline_mode = #tpu.pipeline_mode<synchronous>, transform_indices = @transform_4, window_bounds = array<i64: 8, 1>}, {pipeline_mode = #tpu.pipeline_mode<synchronous>, transform_indices = @transform_5, window_bounds = array<i64: 8, 1>}, {pipeline_mode = #tpu.pipeline_mode<synchronous>, transform_indices = @transform_6, window_bounds = array<i64: 1, 1>}, {transform_indices = @transform_7, window_bounds = array<i64: 1, 128>}]} {
    %c0 = arith.constant 0 : index
    %c0_0 = arith.constant 0 : index
    %0 = vector.load %arg2[%c0, %c0_0] : memref<16x32xbf16, #tpu.memory_space<vmem>>, vector<16x32xbf16>
    %c0_1 = arith.constant 0 : index
    %c0_2 = arith.constant 0 : index
    %1 = vector.load %arg1[%c0_1, %c0_2] : memref<32x128xbf16, #tpu.memory_space<vmem>>, vector<32x128xbf16>
    %cst = arith.constant dense<0.000000e+00> : vector<16x128xf32>
    %2 = tpu.matmul %0, %1, %cst {dimension_numbers = #tpu.dot_dimension_numbers<[1], [0], [0], [1], [0, 0, 1, 1], [], []>} : vector<16x32xbf16>, vector<32x128xbf16>, vector<16x128xf32> -> vector<16x128xf32>
    %c0_3 = arith.constant 0 : index
    %c0_4 = arith.constant 0 : index
    %3 = vector.load %arg3[%c0_3, %c0_4] : memref<16x1xf32, #tpu.memory_space<vmem>>, vector<16x1xf32>
    %4 = vector.broadcast %3 : vector<16x1xf32> to vector<16x128xf32>
    %5 = arith.addf %2, %4 : vector<16x128xf32>
    %cst_5 = arith.constant 0.000000e+00 : f32
    %6 = vector.broadcast %cst_5 : f32 to vector<16x128xf32>
    %7 = arith.maximumf %5, %6 : vector<16x128xf32>
    %c0_6 = arith.constant 0 : index
    %c0_7 = arith.constant 0 : index
    %8 = vector.load %arg4[%c0_6, %c0_7] : memref<8x16xbf16, #tpu.memory_space<vmem>>, vector<8x16xbf16>
    %9 = arith.truncf %7 : vector<16x128xf32> to vector<16x128xbf16>
    %cst_8 = arith.constant dense<0.000000e+00> : vector<8x128xf32>
    %10 = tpu.matmul %8, %9, %cst_8 {dimension_numbers = #tpu.dot_dimension_numbers<[1], [0], [0], [1], [0, 0, 1, 1], [], []>} : vector<8x16xbf16>, vector<16x128xbf16>, vector<8x128xf32> -> vector<8x128xf32>
    %c0_9 = arith.constant 0 : index
    %c0_10 = arith.constant 0 : index
    %11 = vector.load %arg5[%c0_9, %c0_10] : memref<8x1xf32, #tpu.memory_space<vmem>>, vector<8x1xf32>
    %12 = vector.broadcast %11 : vector<8x1xf32> to vector<8x128xf32>
    %13 = arith.addf %10, %12 : vector<8x128xf32>
    %cst_11 = arith.constant 0.000000e+00 : f32
    %14 = vector.broadcast %cst_11 : f32 to vector<8x128xf32>
    %15 = arith.maximumf %13, %14 : vector<8x128xf32>
    %c0_12 = arith.constant 0 : index
    %c0_13 = arith.constant 0 : index
    %16 = vector.load %arg6[%c0_12, %c0_13] : memref<8x1xf32, #tpu.memory_space<vmem>>, vector<8x1xf32>
    %17 = vector.broadcast %16 : vector<8x1xf32> to vector<8x128xf32>
    %18 = arith.mulf %15, %17 : vector<8x128xf32>
    %cst_14 = arith.constant dense<0.000000e+00> : vector<128xf32>
    %19 = vector.multi_reduction <add>, %18, %cst_14 [0] : vector<8x128xf32> to vector<128xf32>
    %20 = vector.shape_cast %19 : vector<128xf32> to vector<1x128xf32>
    %c0_15 = arith.constant 0 : index
    %c0_16 = arith.constant 0 : index
    %21 = vector.load %arg7[%c0_15, %c0_16] : memref<1x1xf32, #tpu.memory_space<vmem>>, vector<1x1xf32>
    %22 = vector.broadcast %21 : vector<1x1xf32> to vector<1x128xf32>
    %23 = arith.addf %20, %22 : vector<1x128xf32>
    %cst_17 = arith.constant 0.000000e+00 : f32
    %24 = vector.broadcast %cst_17 : f32 to vector<1x128xf32>
    %25 = arith.subf %24, %23 : vector<1x128xf32>
    %26 = math.exp %25 : vector<1x128xf32>
    %cst_18 = arith.constant 1.000000e+00 : f32
    %27 = vector.broadcast %cst_18 : f32 to vector<1x128xf32>
    %28 = arith.addf %27, %26 : vector<1x128xf32>
    %29 = tpu.reciprocal %28 {approx = true} : vector<1x128xf32> -> vector<1x128xf32>
    %c0_19 = arith.constant 0 : index
    %c0_20 = arith.constant 0 : index
    %30 = vector.load %arg8[%c0_19, %c0_20] : memref<1x128xf32, #tpu.memory_space<vmem>>, vector<1x128xf32>
    tpu.vector_store %arg8[%c0_19, %c0_20], %29 {strides = array<i32>} : memref<1x128xf32, #tpu.memory_space<vmem>>, vector<1x128xf32>,
    return
  }
  func.func @transform_0(%arg0: i32) -> (i32, i32) {
    %c0_i32 = arith.constant 0 : i32
    %c0_i32_0 = arith.constant 0 : i32
    return %c0_i32, %arg0 : i32, i32
  }
  func.func @transform_1(%arg0: i32) -> (i32, i32) {
    %c0_i32 = arith.constant 0 : i32
    %c0_i32_0 = arith.constant 0 : i32
    %c0_i32_1 = arith.constant 0 : i32
    return %c0_i32, %c0_i32_0 : i32, i32
  }
  func.func @transform_2(%arg0: i32) -> (i32, i32) {
    %c0_i32 = arith.constant 0 : i32
    %c0_i32_0 = arith.constant 0 : i32
    %c0_i32_1 = arith.constant 0 : i32
    return %c0_i32, %c0_i32_0 : i32, i32
  }
  func.func @transform_3(%arg0: i32) -> (i32, i32) {
    %c0_i32 = arith.constant 0 : i32
    %c0_i32_0 = arith.constant 0 : i32
    %c0_i32_1 = arith.constant 0 : i32
    return %c0_i32, %c0_i32_0 : i32, i32
  }
  func.func @transform_4(%arg0: i32) -> (i32, i32) {
    %c0_i32 = arith.constant 0 : i32
    %c0_i32_0 = arith.constant 0 : i32
    %c0_i32_1 = arith.constant 0 : i32
    return %c0_i32, %c0_i32_0 : i32, i32
  }
  func.func @transform_5(%arg0: i32) -> (i32, i32) {
    %c0_i32 = arith.constant 0 : i32
    %c0_i32_0 = arith.constant 0 : i32
    %c0_i32_1 = arith.constant 0 : i32
    return %c0_i32, %c0_i32_0 : i32, i32
  }
  func.func @transform_6(%arg0: i32) -> (i32, i32) {
    %c0_i32 = arith.constant 0 : i32
    %c0_i32_0 = arith.constant 0 : i32
    %c0_i32_1 = arith.constant 0 : i32
    return %c0_i32, %c0_i32_0 : i32, i32
  }
  func.func @transform_7(%arg0: i32) -> (i32, i32) {
    %c0_i32 = arith.constant 0 : i32
    %c0_i32_0 = arith.constant 0 : i32
    return %c0_i32, %arg0 : i32, i32
  }
}

</mosaic_0001>

<llo_original>
// kernel: tpu_custom_call.1
$region0: #{tpu_custom_call.1}
  #allocation0 [shape = 'u32[]', space=smem, size = 0x4, offset = 0x4, fixed_abs, tag = 'smem constant byte address 0x4 - core index']
  #allocation1 [shape = 'u32[144,128]{1,0:T(1,128)}', space=vmem, size = 0x12000, scoped, tag = 'internal scratch']
  #allocation2 [shape = 'f32[1,1]{1,0:T(1,128)S(1)}', space=vmem, size = 0x200, scoped, tag = 'scoped memory for tpu_custom_call.1']
  %s0 = inlined_call_operand.vmem [shape: bf16[32,128], index: 0, kind: input, shape index: {}]
  %s1 = inlined_call_operand.vmem [shape: bf16[16,32], index: 1, kind: input, shape index: {}]
  %s2 = inlined_call_operand.vmem [shape: f32[16,1], index: 2, kind: input, shape index: {}]
  %s3 = inlined_call_operand.vmem [shape: bf16[8,16], index: 3, kind: input, shape index: {}]
  %s4 = inlined_call_operand.vmem [shape: f32[8,1], index: 4, kind: input, shape index: {}]
  %s5 = inlined_call_operand.vmem [shape: f32[8,1], index: 5, kind: input, shape index: {}]
  %s6 = inlined_call_operand.<no memory space> [shape: f32[1,1], index: 6, kind: input, shape index: {}]
  %s7 = inlined_call_operand.hbm [shape: f32[1,128], index: 7, kind: output, shape index: {}]
  %s8 = sld [smem:[#allocation0]]
  $region38: #{tpu_custom_call.1} parent=0
    _
  %s10 = ssub.s32 1, %s8
  %s11 = scalar_select 0, %s10, %s8
  %v12 = vstv %s6
  %13 = vst [vmem:[#allocation2] sm:$0x1] %v12
  $region1: #{tpu_custom_call.1} parent=0
    #allocation3 [shape = 'u8[512]{0}', space=vmem, size = 0x400, scoped, tag = 'output window, operand 0, single buffered']
    #allocation4 [shape = 's32[1]{0}', space=sflag, size = 0x4, scoped, tag = 'scoped memory for tpu_custom_call.1']
    %14 = vsyncpa [#allocation4], 0
    // Predicated region
    $region2: #{tpu_custom_call.1} parent=1 // pred_check
      _
    $region3: #{tpu_custom_call.1} parent=1 // pred_check_branch
      %16 = sbr.rel (0) target = $region5
    $region4: #{tpu_custom_call.1} parent=1 // pred_region
      _
    $region5: #{tpu_custom_call.1} parent=1 // pred_fallthru
      _
    // Predicated region
    $region6: #{tpu_custom_call.1} parent=1 // pred_check
      _
    $region7: #{tpu_custom_call.1} parent=1 // pred_check_branch
      %18 = sbr.rel (0) target = $region9
    $region8: #{tpu_custom_call.1} parent=1 // pred_region
      _
    $region9: #{tpu_custom_call.1} parent=1 // pred_fallthru
      _
    // Predicated region
    $region10: #{tpu_custom_call.1} parent=1 // pred_check
      _
    $region11: #{tpu_custom_call.1} parent=1 // pred_check_branch
      %20 = sbr.rel (0) target = $region13
    $region12: #{tpu_custom_call.1} parent=1 // pred_region
      _
    $region13: #{tpu_custom_call.1} parent=1 // pred_fallthru
      _
    // Predicated region
    $region14: #{tpu_custom_call.1} parent=1 // pred_check
      _
    $region15: #{tpu_custom_call.1} parent=1 // pred_check_branch
      %22 = sbr.rel (0) target = $region17
    $region16: #{tpu_custom_call.1} parent=1 // pred_region
      _
    $region17: #{tpu_custom_call.1} parent=1 // pred_fallthru
      _
    // Predicated region
    $region18: #{tpu_custom_call.1} parent=1 // pred_check
      _
    $region19: #{tpu_custom_call.1} parent=1 // pred_check_branch
      %24 = sbr.rel (0) target = $region21
    $region20: #{tpu_custom_call.1} parent=1 // pred_region
      _
    $region21: #{tpu_custom_call.1} parent=1 // pred_fallthru
      _
    // Predicated region
    $region22: #{tpu_custom_call.1} parent=1 // pred_check
      _
    $region23: #{tpu_custom_call.1} parent=1 // pred_check_branch
      %26 = sbr.rel (0) target = $region25
    $region24: #{tpu_custom_call.1} parent=1 // pred_region
      _
    $region25: #{tpu_custom_call.1} parent=1 // pred_fallthru
      _
    // Predicated region
    $region26: #{tpu_custom_call.1} parent=1 // pred_check
      _
    $region27: #{tpu_custom_call.1} parent=1 // pred_check_branch
      %28 = sbr.rel (0) target = $region29
    $region28: #{tpu_custom_call.1} parent=1 // pred_region
      _
    $region29: #{tpu_custom_call.1} parent=1 // pred_fallthru
      _
    %v30 = vld [vmem:[%s1] sm:$0xf]
    %v31 = vld [vmem:[%s1 + $0x4] sm:$0xf]
    %v32 = vld [vmem:[%s0] sm:$0xf]
    %v33 = vld [vmem:[%s0 + $0x4] sm:$0xf]
    %v34 = vld [vmem:[%s0 + $0x8] sm:$0xf]
    %v35 = vld [vmem:[%s0 + $0xc] sm:$0xf]
    %v36 = vld [vmem:[%s2] sm:$0xff]
    %v37 = vld [vmem:[%s2 + $0x8] sm:$0xff]
    %39 = vset.pattern.permute.xlu0 0
    %40 = vperm.xlu0 %39, %v36
    %v41 = vpop.permute.xlu0 %40
    %44 = vset.pattern.permute.xlu0 0
    %45 = vperm.xlu0 %44, %v37
    %v46 = vpop.permute.xlu0 %45
    %v50 = vunpack.c.l.b16 %v30
    %v51 = vunpack.c.l.b16 %v31
    %v52 = vpack.c.b16 %v51, %v50
    %v57 = vunpack.c.l.b16 %v32
    %v58 = vunpack.c.l.b16 %v33
    %v59 = vunpack.c.l.b16 %v34
    %v60 = vunpack.c.l.b16 %v35
    %v61 = vpack.c.b16 %v58, %v57
    %v62 = vpack.c.b16 %v60, %v59
    %vm65 = vcmask 261120
    %v67 = vsel %vm65, %v52, 0
    %69 = vmatprep.subr.bf16.mxu0 0
    %70 = vmatpush1.bf16.msra.mxu0 0
    %71 = vmatprep.subr.bf16.mxu0 0
    %72 = vmatpush1.bf16.msra.mxu0 0
    %73 = vmatprep.subr.bf16.mxu0 0
    %74 = vmatpush1.bf16.msra.mxu0 0
    %75 = vmatprep.subr.bf16.mxu0 0
    %76 = vmatpush1.bf16.msra.mxu0 0
    %77 = vmatprep.subr.bf16.mxu0 0
    %78 = vmatpush1.bf16.msra.mxu0 0
    %79 = vmatprep.subr.bf16.mxu0 0
    %80 = vmatpush1.bf16.msra.mxu0 0
    %81 = vmatprep.subr.bf16.mxu0 0
    %82 = vmatpush1.bf16.msra.mxu0 %v62
    %83 = vmatprep.subr.bf16.mxu0 0
    %84 = vmatpush1.bf16.msra.mxu0 %v61
    %85 = vmatprep.subr.bf16.mxu0 0
    %86 = vmatpush2.bf16.msra.mxu0 0
    %87 = vmatprep.subr.bf16.mxu0 0
    %88 = vmatpush2.bf16.msra.mxu0 0
    %89 = vmatprep.subr.bf16.mxu0 0
    %90 = vmatpush2.bf16.msra.mxu0 0
    %91 = vmatprep.subr.bf16.mxu0 0
    %92 = vmatpush2.bf16.msra.mxu0 0
    %93 = vmatprep.subr.bf16.mxu0 0
    %94 = vmatpush2.bf16.msra.mxu0 0
    %95 = vmatprep.subr.bf16.mxu0 0
    %96 = vmatpush2.bf16.msra.mxu0 0
    %97 = vmatprep.subr.bf16.mxu0 0
    %98 = vmatpush2.bf16.msra.mxu0 0
    %99 = vmatprep.subr.bf16.mxu0 0
    %100 = vmatpush2.bf16.msra.mxu0 0
    %101 = vmatprep.mubr.bf16.mxu0 0
    %102 = vmatmul.mubr.bf16.gmra.mxu0 %v67
    %v103 = vpop.f32.mrf.mxu0
    %v104 = vadd.f32 %v41, %v103
    %v105 = vpop.f32.mrf.mxu0
    %v106 = vpop.f32.mrf.mxu0
    %v107 = vadd.f32 %v46, %v106
    %v108 = vpop.f32.mrf.mxu0
    %109 = vdwg.mxu0
    %v110 = vmax.f32 %v104, 0.0
    %v111 = vmax.f32 %v107, 0.0
    %v112 = vld [vmem:[%s3] sm:$0xf]
    %v113 = vpack.c.bf16 %v111, %v110
    %v114 = vld [vmem:[%s4] sm:$0xff]
    %116 = vset.pattern.permute.xlu0 0
    %117 = vperm.xlu0 %116, %v114
    %v118 = vpop.permute.xlu0 %117
    %vm120 = vcmask 130048
    %v122 = vsel %vm120, %v112, 0
    %124 = vmatprep.subr.bf16.mxu0 0
    %125 = vmatpush1.bf16.msra.mxu0 0
    %126 = vmatprep.subr.bf16.mxu0 0
    %127 = vmatpush1.bf16.msra.mxu0 0
    %128 = vmatprep.subr.bf16.mxu0 0
    %129 = vmatpush1.bf16.msra.mxu0 0
    %130 = vmatprep.subr.bf16.mxu0 0
    %131 = vmatpush1.bf16.msra.mxu0 0
    %132 = vmatprep.subr.bf16.mxu0 0
    %133 = vmatpush1.bf16.msra.mxu0 0
    %134 = vmatprep.subr.bf16.mxu0 0
    %135 = vmatpush1.bf16.msra.mxu0 0
    %136 = vmatprep.subr.bf16.mxu0 0
    %137 = vmatpush1.bf16.msra.mxu0 0
    %138 = vmatprep.subr.bf16.mxu0 0
    %139 = vmatpush1.bf16.msra.mxu0 %v113
    %140 = vmatprep.subr.bf16.mxu0 0
    %141 = vmatpush2.bf16.msra.mxu0 0
    %142 = vmatprep.subr.bf16.mxu0 0
    %143 = vmatpush2.bf16.msra.mxu0 0
    %144 = vmatprep.subr.bf16.mxu0 0
    %145 = vmatpush2.bf16.msra.mxu0 0
    %146 = vmatprep.subr.bf16.mxu0 0
    %147 = vmatpush2.bf16.msra.mxu0 0
    %148 = vmatprep.subr.bf16.mxu0 0
    %149 = vmatpush2.bf16.msra.mxu0 0
    %150 = vmatprep.subr.bf16.mxu0 0
    %151 = vmatpush2.bf16.msra.mxu0 0
    %152 = vmatprep.subr.bf16.mxu0 0
    %153 = vmatpush2.bf16.msra.mxu0 0
    %154 = vmatprep.subr.bf16.mxu0 0
    %155 = vmatpush2.bf16.msra.mxu0 0
    %156 = vmatprep.mubr.bf16.mxu0 0
    %157 = vmatmul.mubr.bf16.gmra.mxu0 %v122
    %v158 = vpop.f32.mrf.mxu0
    %v159 = vadd.f32 %v118, %v158
    %v160 = vpop.f32.mrf.mxu0
    %v161 = vpop.f32.mrf.mxu0
    %v162 = vpop.f32.mrf.mxu0
    %163 = vdwg.mxu0
    %v164 = vmax.f32 %v159, 0.0
    %v165 = vld [vmem:[%s5] sm:$0xff]
    %167 = vset.pattern.permute.xlu0 0
    %168 = vperm.xlu0 %167, %v165
    %v169 = vpop.permute.xlu0 %168
    %v171 = vmul.f32 %v164, %v169
    %v172 = vrot.slane %v171, 4
    %v173 = vadd.f32 %v171, %v172
    %v174 = vrot.slane %v173, 2
    %v175 = vadd.f32 %v173, %v174
    %v176 = vrot.slane %v175, 1
    %v177 = vadd.f32 %v175, %v176
    %v178 = vld [vmem:[#allocation2] sm:$0x1]
    %180 = vset.pattern.permute.xlu0 0
    %181 = vperm.xlu0 %180, %v178
    %v182 = vpop.permute.xlu0 %181
    %v184 = vlaneseq
    %v185 = vshrl.u32 %v184, 7
    %v186 = vsub.s32 0, %v185
    %v187 = vrot.slane %v182, %v186
    %v188 = vadd.f32 %v177, %v187
    %v189 = vsub.f32 0.0, %v188
    %v190 = vmul.f32 %v189, 1.442695
    %v191 = vpow.pop %v190
    %v192 = vadd.f32 %v191, 1.0
    %v193 = vrcp.pop %v192
    %194 = vst [vmem:[#allocation3] sm:$0x1] %v193
    // Predicated region
    $region30: #{tpu_custom_call.1} parent=1 // pred_check
      _
    $region31: #{tpu_custom_call.1} parent=1 // pred_check_branch
      %196 = sbr.rel (0) target = $region33
    $region32: #{tpu_custom_call.1} parent=1 // pred_region
      %s198 = ssub.s32 16, 16
      %199 = vsyncadd [#allocation4], %s198
      %s201 = sshll.u32 [#allocation3], 4
      %s202 = int_to_ptr.vmem [resolvable:$true] %s201
      %204 = dma.vmem_to_hbm [thread:$0]  %s202, 16, %s7, [#allocation4]
    $region33: #{tpu_custom_call.1} parent=1 // pred_fallthru
      _
    // Predicated region
    $region34: #{tpu_custom_call.1} parent=1 // pred_check
      _
    $region35: #{tpu_custom_call.1} parent=1 // pred_check_branch
      %206 = sbr.rel (0) target = $region37
    $region36: #{tpu_custom_call.1} parent=1 // pred_region
      %207 = dma.done [#allocation4], 16
    $region37: #{tpu_custom_call.1} parent=1 // pred_fallthru
      _
    %208 = vsyncpa [#allocation4], 1

</llo_original>
